<compile_context>
chip_gen: v7x
topology: tpu7x:2x2x1
jax: 0.10.0
libtpu: 0.0.40
codegen_flags: <defaults>
</compile_context>

<pallas_src>
import jax
import jax.numpy as jnp
from jax import lax
from jax.experimental import pallas as pl
from jax.experimental.pallas import tpu as pltpu


def _round_up(x, m):
    return ((x + m - 1) // m) * m


def gcn_agg_kernel(a_ref, xw_ref, dinv_ref, b_ref, o_ref):
    """One (row-tile, k-tile) step of relu(D^-1/2 A_hat D^-1/2 @ XW + b).

    a_ref   : (tm, tk)   int8  raw adjacency counts (incl. unit self loops)
    xw_ref  : (xw_rows, H) bf16, rows pre-scaled by d_inv_sqrt[src]
              (xw_rows == tk when streamed, == n_pad_k when VMEM-resident)
    dinv_ref: (tm, 1)    f32   d_inv_sqrt[dst] for this row tile
    b_ref   : (1, H)     f32   bias
    o_ref   : (tm, H)    f32   resident across k -> used directly as accumulator
    """
    k = pl.program_id(1)
    tk = a_ref.shape[1]

    @pl.when(k == 0)
    def _():
        o_ref[...] = jnp.zeros_like(o_ref)

    # int8 -> f32 -> bf16 upcast on the VPU (free filler; HBM streams int8).
    a_bf16 = a_ref[...].astype(jnp.float32).astype(jnp.bfloat16)

    if xw_ref.shape[0] == tk:
        xw_tile = xw_ref[...]                      # streamed (tk, H) block
    else:
        start = pl.multiple_of(k * tk, 128)        # VMEM-resident XW: slice chunk
        xw_tile = xw_ref[pl.ds(start, tk), :]

    o_ref[...] += jnp.dot(a_bf16, xw_tile, preferred_element_type=jnp.float32)

    @pl.when(k == pl.num_programs(1) - 1)
    def _():
        # D^{-1/2} row scale + bias + ReLU, exactly once, in place.
        h = o_ref[...] * dinv_ref[...] + b_ref[...]
        o_ref[...] = jnp.maximum(h, 0.0)
        # TODO(synk): F.dropout(training=True) would need pltpu.prng_*; GCN_En
        # eval-mode semantics make dropout the identity, so it is omitted.


def _pick_tiles(n, tile_m=None, tile_k=None):
    n128 = _round_up(max(n, 1), 128)
    tm = tile_m if tile_m is not None else min(512, n128)
    n_pad_m = _round_up(n, tm)
    if tile_k is None:
        n_pad_k = n_pad_m
        tk = max(t for t in (2048, 1024, 512, 256, 128, tm) if n_pad_k % t == 0)
    else:
        tk = tile_k
        n_pad_k = _round_up(n, tk)
    return tm, tk, n_pad_m, n_pad_k


def gcn_en_forward(x, edge_index, weight, bias, tile_m=None, tile_k=None):
    """GCN_En.forward (eval mode): relu(GCNConv(x, edge_index))."""
    n = x.shape[0]
    hidden = weight.shape[1]
    h_pad = _round_up(hidden, 128)                      # lane-dense output

    tm, tk, n_pad_m, n_pad_k = _pick_tiles(n, tile_m, tile_k)

    # ---------------- glue: raw int8 adjacency counts (single N^2 pass) ------
    # Faithful to torch_geometric gcn_norm with unit edge weights:
    #   duplicate (non-self) edges sum, exactly one unit self loop per node,
    #   aggregation at the TARGET node (row = dst, col = src).
    src = edge_index[0]
    dst = edge_index[1]
    nonself = (src != dst)
    # TODO(synk): int8 counts overflow if a node pair has >127 duplicate edges.
    a_i8 = jnp.zeros((n_pad_m, n_pad_k), dtype=jnp.int8)
    a_i8 = a_i8.at[dst, src].add(nonself.astype(jnp.int8))
    diag = jnp.arange(n)
    a_i8 = a_i8.at[diag, diag].add(jnp.int8(1))

    # Degrees via O(E) segment sum (no dense N^2 pass); deg >= 1 always.
    deg = jnp.zeros((n,), jnp.int32).at[dst].add(nonself.astype(jnp.int32)) + 1
    d_inv_sqrt = lax.rsqrt(deg.astype(jnp.float32))

    # ---------------- glue: XW once, src-scaled, padded + bf16 ---------------
    xw = jnp.dot(x, weight, preferred_element_type=jnp.float32)     # [N, H]
    xw_scaled = (xw * d_inv_sqrt[:, None]).astype(jnp.bfloat16)
    xw_pad = jnp.zeros((n_pad_k, h_pad), jnp.bfloat16)
    xw_pad = xw_pad.at[:n, :hidden].set(xw_scaled)

    dinv_rows = jnp.zeros((n_pad_m, 1), jnp.float32).at[:n, 0].set(d_inv_sqrt)
    bias2d = jnp.zeros((1, h_pad), jnp.float32).at[0, :hidden].set(
        bias.astype(jnp.float32))

    # ---------------- kernel launch -------------------------------------------
    # Keep XW fully VMEM-resident when small enough (double-buffered copy),
    # otherwise stream (tk, H) chunks.
    xw_resident = (n_pad_k * h_pad * 2) <= (8 << 20)
    if xw_resident:
        xw_spec = pl.BlockSpec((n_pad_k, h_pad), lambda i, k: (0, 0))
        xw_rows = n_pad_k
    else:
        xw_spec = pl.BlockSpec((tk, h_pad), lambda i, k: (k, 0))
        xw_rows = tk

    vmem_bytes = (2 * tm * tk * 1            # A int8, double-buffered
                  + 2 * xw_rows * h_pad * 2  # XW bf16
                  + 2 * tm * h_pad * 4       # output f32
                  + 2 * tm * 4 + 2 * h_pad * 4)
    vmem_limit = max(int(vmem_bytes * 1.5), 32 << 20)

    grid = (n_pad_m // tm, n_pad_k // tk)

    out = pl.pallas_call(
        gcn_agg_kernel,
        out_shape=jax.ShapeDtypeStruct((n_pad_m, h_pad), jnp.float32),
        grid_spec=pltpu.PrefetchScalarGridSpec(
            num_scalar_prefetch=0,
            grid=grid,
            in_specs=[
                pl.BlockSpec((tm, tk), lambda i, k: (i, k)),     # A_hat tile (int8)
                xw_spec,                                         # XW (resident/stream)
                pl.BlockSpec((tm, 1), lambda i, k: (i, 0)),      # d_inv_sqrt rows
                pl.BlockSpec((1, h_pad), lambda i, k: (0, 0)),   # bias
            ],
            out_specs=pl.BlockSpec((tm, h_pad), lambda i, k: (i, 0)),
        ),
        compiler_params=pltpu.CompilerParams(
            dimension_semantics=("parallel", "arbitrary"),
            vmem_limit_bytes=vmem_limit,
        ),
    )(a_i8, xw_pad, dinv_rows, bias2d)

    # Padded rows evaluate to relu(bias); slice them (and lane padding) away.
    return out[:n, :hidden]


def _reference(x, edge_index, weight, bias):
    n = x.shape[0]
    src, dst = edge_index[0], edge_index[1]
    w_e = jnp.where(src != dst, 1.0, 0.0).astype(jnp.float32)
    a = jnp.zeros((n, n), jnp.float32).at[dst, src].add(w_e)
    a = a + jnp.eye(n, dtype=jnp.float32)
    deg = a.sum(axis=1)
    dis = jnp.where(deg > 0, lax.rsqrt(deg), 0.0)
    a = dis[:, None] * a * dis[None, :]
    return jnp.maximum(a @ (x @ weight) + bias[None, :], 0.0)


if __name__ == "__main__":
    key = jax.random.PRNGKey(0)
    k_x, k_e, k_w = jax.random.split(key, 3)

    num_nodes = 16
    num_features = 8
    hidden_dim = 32
    num_edges = 40

    x = jax.random.normal(k_x, (num_nodes, num_features), dtype=jnp.float32)
    edge_index = jax.random.randint(
        k_e, (2, num_edges), minval=0, maxval=num_nodes, dtype=jnp.int32
    )
    weight = jax.random.normal(
        k_w, (num_features, hidden_dim), dtype=jnp.float32
    ) * (1.0 / jnp.sqrt(num_features))
    bias = jnp.zeros((hidden_dim,), dtype=jnp.float32)

    # Small demo shape: heuristic gives a single-block grid (fast path).
    out = gcn_en_forward(x, edge_index, weight, bias)
    jax.block_until_ready(out)

    assert out.shape == (num_nodes, hidden_dim)
    assert bool(jnp.all(out >= 0.0))
    assert bool(jnp.all(jnp.isfinite(out)))
    ref = _reference(x, edge_index, weight, bias)
    assert bool(jnp.max(jnp.abs(out - ref)) < 5e-2)

    # Second small check that exercises the multi-tile accumulation path
    # (3x3 grid, VMEM-resident XW sliced with pl.ds inside the kernel).
    n2, e2 = 300, 900
    kx2, ke2 = jax.random.split(jax.random.PRNGKey(1), 2)
    x2 = jax.random.normal(kx2, (n2, num_features), dtype=jnp.float32)
    ei2 = jax.random.randint(ke2, (2, e2), minval=0, maxval=n2, dtype=jnp.int32)
    out2 = gcn_en_forward(x2, ei2, weight, bias, tile_m=128, tile_k=128)
    jax.block_until_ready(out2)
    ref2 = _reference(x2, ei2, weight, bias)
    assert out2.shape == (n2, hidden_dim)
    assert bool(jnp.max(jnp.abs(out2 - ref2)) < 5e-2)

    print("KERNEL_OK")
</pallas_src>

<mosaic_0001>
module attributes {stable_mosaic.version = 11 : i64} {
  func.func @gcn_agg_kernel(%arg0: i32, %arg1: i32, %arg2: memref<128x128xi8, #tpu.memory_space<vmem>>, %arg3: memref<128x128xbf16, #tpu.memory_space<vmem>>, %arg4: memref<128x1xf32, #tpu.memory_space<vmem>>, %arg5: memref<1x128xf32, #tpu.memory_space<vmem>>, %arg6: memref<128x128xf32, #tpu.memory_space<vmem>>) attributes {dimension_semantics = [#tpu.dimension_semantics<parallel>, #tpu.dimension_semantics<arbitrary>], iteration_bounds = array<i64: 1, 1>, scalar_prefetch = 0 : i64, scratch_operands = 0 : i64, tpu.core_type = #tpu.core_type<tc>, window_params = [{transform_indices = @transform_0, window_bounds = array<i64: 128, 128>}, {pipeline_mode = #tpu.pipeline_mode<synchronous>, transform_indices = @transform_1, window_bounds = array<i64: 128, 128>}, {transform_indices = @transform_2, window_bounds = array<i64: 128, 1>}, {pipeline_mode = #tpu.pipeline_mode<synchronous>, transform_indices = @transform_3, window_bounds = array<i64: 1, 128>}, {transform_indices = @transform_4, window_bounds = array<i64: 128, 128>}]} {
    %c0_i32 = arith.constant 0 : i32
    %0 = arith.cmpi eq, %arg1, %c0_i32 : i32
    %1 = arith.extui %0 : i1 to i32
    %c0_i32_0 = arith.constant 0 : i32
    %2 = arith.cmpi ne, %1, %c0_i32_0 : i32
    scf.if %2 {
      %cst_10 = arith.constant 0.000000e+00 : f32
      %14 = vector.broadcast %cst_10 : f32 to vector<128x128xf32>
      %c0_11 = arith.constant 0 : index
      %c0_12 = arith.constant 0 : index
      %15 = vector.load %arg6[%c0_11, %c0_12] : memref<128x128xf32, #tpu.memory_space<vmem>>, vector<128x128xf32>
      tpu.vector_store %arg6[%c0_11, %c0_12], %14 {strides = array<i32>} : memref<128x128xf32, #tpu.memory_space<vmem>>, vector<128x128xf32>,
    } else {
    }
    %c0 = arith.constant 0 : index
    %c0_1 = arith.constant 0 : index
    %3 = vector.load %arg2[%c0, %c0_1] : memref<128x128xi8, #tpu.memory_space<vmem>>, vector<128x128xi8>
    %4 = arith.sitofp %3 : vector<128x128xi8> to vector<128x128xf32>
    %5 = arith.truncf %4 : vector<128x128xf32> to vector<128x128xbf16>
    %c0_2 = arith.constant 0 : index
    %c0_3 = arith.constant 0 : index
    %6 = vector.load %arg3[%c0_2, %c0_3] : memref<128x128xbf16, #tpu.memory_space<vmem>>, vector<128x128xbf16>
    %c0_4 = arith.constant 0 : index
    %c0_5 = arith.constant 0 : index
    %7 = vector.load %arg6[%c0_4, %c0_5] : memref<128x128xf32, #tpu.memory_space<vmem>>, vector<128x128xf32>
    %cst = arith.constant dense<0.000000e+00> : vector<128x128xf32>
    %8 = tpu.matmul %5, %6, %cst {dimension_numbers = #tpu.dot_dimension_numbers<[1], [0], [0], [1], [0, 0, 1, 1], [], []>} : vector<128x128xbf16>, vector<128x128xbf16>, vector<128x128xf32> -> vector<128x128xf32>
    %9 = arith.addf %7, %8 : vector<128x128xf32>
    %c0_6 = arith.constant 0 : index
    %c0_7 = arith.constant 0 : index
    %10 = vector.load %arg6[%c0_6, %c0_7] : memref<128x128xf32, #tpu.memory_space<vmem>>, vector<128x128xf32>
    tpu.vector_store %arg6[%c0_6, %c0_7], %9 {strides = array<i32>} : memref<128x128xf32, #tpu.memory_space<vmem>>, vector<128x128xf32>,
    %c0_i32_8 = arith.constant 0 : i32
    %11 = arith.cmpi eq, %arg1, %c0_i32_8 : i32
    %12 = arith.extui %11 : i1 to i32
    %c0_i32_9 = arith.constant 0 : i32
    %13 = arith.cmpi ne, %12, %c0_i32_9 : i32
    scf.if %13 {
      %c0_10 = arith.constant 0 : index
      %c0_11 = arith.constant 0 : index
      %14 = vector.load %arg6[%c0_10, %c0_11] : memref<128x128xf32, #tpu.memory_space<vmem>>, vector<128x128xf32>
      %c0_12 = arith.constant 0 : index
      %c0_13 = arith.constant 0 : index
      %15 = vector.load %arg4[%c0_12, %c0_13] : memref<128x1xf32, #tpu.memory_space<vmem>>, vector<128x1xf32>
      %16 = vector.broadcast %15 : vector<128x1xf32> to vector<128x128xf32>
      %17 = arith.mulf %14, %16 : vector<128x128xf32>
      %c0_14 = arith.constant 0 : index
      %c0_15 = arith.constant 0 : index
      %18 = vector.load %arg5[%c0_14, %c0_15] : memref<1x128xf32, #tpu.memory_space<vmem>>, vector<1x128xf32>
      %19 = vector.broadcast %18 : vector<1x128xf32> to vector<128x128xf32>
      %20 = arith.addf %17, %19 : vector<128x128xf32>
      %cst_16 = arith.constant 0.000000e+00 : f32
      %21 = vector.broadcast %cst_16 : f32 to vector<128x128xf32>
      %22 = arith.maximumf %20, %21 : vector<128x128xf32>
      %c0_17 = arith.constant 0 : index
      %c0_18 = arith.constant 0 : index
      %23 = vector.load %arg6[%c0_17, %c0_18] : memref<128x128xf32, #tpu.memory_space<vmem>>, vector<128x128xf32>
      tpu.vector_store %arg6[%c0_17, %c0_18], %22 {strides = array<i32>} : memref<128x128xf32, #tpu.memory_space<vmem>>, vector<128x128xf32>,
    } else {
    }
    return
  }
  func.func @transform_0(%arg0: i32, %arg1: i32) -> (i32, i32) {
    %c0_i32 = arith.constant 0 : i32
    return %arg0, %arg1 : i32, i32
  }
  func.func @transform_1(%arg0: i32, %arg1: i32) -> (i32, i32) {
    %c0_i32 = arith.constant 0 : i32
    %c0_i32_0 = arith.constant 0 : i32
    %c0_i32_1 = arith.constant 0 : i32
    return %c0_i32, %c0_i32_0 : i32, i32
  }
  func.func @transform_2(%arg0: i32, %arg1: i32) -> (i32, i32) {
    %c0_i32 = arith.constant 0 : i32
    %c0_i32_0 = arith.constant 0 : i32
    return %arg0, %c0_i32 : i32, i32
  }
  func.func @transform_3(%arg0: i32, %arg1: i32) -> (i32, i32) {
    %c0_i32 = arith.constant 0 : i32
    %c0_i32_0 = arith.constant 0 : i32
    %c0_i32_1 = arith.constant 0 : i32
    return %c0_i32, %c0_i32_0 : i32, i32
  }
  func.func @transform_4(%arg0: i32, %arg1: i32) -> (i32, i32) {
    %c0_i32 = arith.constant 0 : i32
    %c0_i32_0 = arith.constant 0 : i32
    return %arg0, %c0_i32 : i32, i32
  }
}

</mosaic_0001>

<llo_original>
// kernel: tpu_custom_call.1
$region0: #{tpu_custom_call.1}
  #allocation0 [shape = 'u32[]', space=smem, size = 0x4, offset = 0x4, fixed_abs, tag = 'smem constant byte address 0x4 - core index']
  #allocation1 [shape = 'u32[144,128]{1,0:T(1,128)}', space=vmem, size = 0x12000, scoped, tag = 'internal scratch']
  %s0 = inlined_call_operand.vmem [shape: s8[128,128], index: 0, kind: input, shape index: {}]
  %s1 = inlined_call_operand.vmem [shape: bf16[128,128], index: 1, kind: input, shape index: {}]
  %s2 = inlined_call_operand.vmem [shape: f32[128,1], index: 2, kind: input, shape index: {}]
  %s3 = inlined_call_operand.vmem [shape: f32[1,128], index: 3, kind: input, shape index: {}]
  %s4 = inlined_call_operand.hbm [shape: f32[128,128], index: 4, kind: output, shape index: {}]
  %s5 = sld [smem:[#allocation0]]
  $region34: #{tpu_custom_call.1} parent=0
    _
  %s7 = ssub.s32 1, %s5
  %s8 = scalar_select 0, %s7, %s5
  $region1: #{tpu_custom_call.1} parent=0
    #allocation2 [shape = 'u8[65536]{0}', space=vmem, size = 0x10000, scoped, tag = 'output window, operand 0, single buffered']
    #allocation3 [shape = 's32[1]{0}', space=sflag, size = 0x4, scoped, tag = 'scoped memory for tpu_custom_call.1']
    %9 = vsyncpa [#allocation3], 0
    // Predicated region
    $region2: #{tpu_custom_call.1} parent=1 // pred_check
      _
    $region3: #{tpu_custom_call.1} parent=1 // pred_check_branch
      %11 = sbr.rel (0) target = $region5
    $region4: #{tpu_custom_call.1} parent=1 // pred_region
      _
    $region5: #{tpu_custom_call.1} parent=1 // pred_fallthru
      _
    // Predicated region
    $region6: #{tpu_custom_call.1} parent=1 // pred_check
      _
    $region7: #{tpu_custom_call.1} parent=1 // pred_check_branch
      %13 = sbr.rel (0) target = $region9
    $region8: #{tpu_custom_call.1} parent=1 // pred_region
      _
    $region9: #{tpu_custom_call.1} parent=1 // pred_fallthru
      _
    // Predicated region
    $region10: #{tpu_custom_call.1} parent=1 // pred_check
      _
    $region11: #{tpu_custom_call.1} parent=1 // pred_check_branch
      %15 = sbr.rel (0) target = $region13
    $region12: #{tpu_custom_call.1} parent=1 // pred_region
      _
    $region13: #{tpu_custom_call.1} parent=1 // pred_fallthru
      _
    // Predicated region
    $region14: #{tpu_custom_call.1} parent=1 // pred_check
      _
    $region15: #{tpu_custom_call.1} parent=1 // pred_check_branch
      %17 = sbr.rel (0) target = $region17
    $region16: #{tpu_custom_call.1} parent=1 // pred_region
      _
    $region17: #{tpu_custom_call.1} parent=1 // pred_fallthru
      _
    %p19 = scmp.eq.s32.totalorder 0, 0
    // Predicated region
    $region18: #{tpu_custom_call.1} parent=1 // pred_check
      %p20 = pneg %p19
    $region19: #{tpu_custom_call.1} parent=1 // pred_check_branch
      %22 = sbr.rel (%p20) target = $region21
    $region20: #{tpu_custom_call.1} parent=1 // pred_region
      %23 = vst [vmem:[#allocation2] sm:$0xff] 0.0
      %24 = vst [vmem:[#allocation2 + $0x8] sm:$0xff] 0.0
      %25 = vst [vmem:[#allocation2 + $0x10] sm:$0xff] 0.0
      %26 = vst [vmem:[#allocation2 + $0x18] sm:$0xff] 0.0
      %27 = vst [vmem:[#allocation2 + $0x20] sm:$0xff] 0.0
      %28 = vst [vmem:[#allocation2 + $0x28] sm:$0xff] 0.0
      %29 = vst [vmem:[#allocation2 + $0x30] sm:$0xff] 0.0
      %30 = vst [vmem:[#allocation2 + $0x38] sm:$0xff] 0.0
      %31 = vst [vmem:[#allocation2 + $0x40] sm:$0xff] 0.0
      %32 = vst [vmem:[#allocation2 + $0x48] sm:$0xff] 0.0
      %33 = vst [vmem:[#allocation2 + $0x50] sm:$0xff] 0.0
      %34 = vst [vmem:[#allocation2 + $0x58] sm:$0xff] 0.0
      %35 = vst [vmem:[#allocation2 + $0x60] sm:$0xff] 0.0
      %36 = vst [vmem:[#allocation2 + $0x68] sm:$0xff] 0.0
      %37 = vst [vmem:[#allocation2 + $0x70] sm:$0xff] 0.0
      %38 = vst [vmem:[#allocation2 + $0x78] sm:$0xff] 0.0
    $region21: #{tpu_custom_call.1} parent=1 // pred_fallthru
      _
    %v39 = vld [vmem:[%s0] sm:$0xff]
    %v40 = vld [vmem:[%s0 + $0x8] sm:$0xff]
    %v41 = vld [vmem:[%s0 + $0x10] sm:$0xff]
    %v42 = vld [vmem:[%s0 + $0x18] sm:$0xff]
    %v43 = vunpack.c.l.s8.bf16 %v39
    %v44 = vunpack.c.h.s8.bf16 %v39
    %v45 = vunpack.c.l.s8.bf16 %v40
    %v46 = vunpack.c.h.s8.bf16 %v40
    %v47 = vunpack.c.l.s8.bf16 %v41
    %v48 = vunpack.c.h.s8.bf16 %v41
    %v49 = vunpack.c.l.s8.bf16 %v42
    %v50 = vunpack.c.h.s8.bf16 %v42
    %v51 = vld [vmem:[%s1] sm:$0xf]
    %v52 = vld [vmem:[%s1 + $0x4] sm:$0xf]
    %v53 = vld [vmem:[%s1 + $0x8] sm:$0xf]
    %v54 = vld [vmem:[%s1 + $0xc] sm:$0xf]
    %v55 = vld [vmem:[%s1 + $0x10] sm:$0xf]
    %v56 = vld [vmem:[%s1 + $0x14] sm:$0xf]
    %v57 = vld [vmem:[%s1 + $0x18] sm:$0xf]
    %v58 = vld [vmem:[%s1 + $0x1c] sm:$0xf]
    %v59 = vld [vmem:[%s1 + $0x20] sm:$0xf]
    %v60 = vld [vmem:[%s1 + $0x24] sm:$0xf]
    %v61 = vld [vmem:[%s1 + $0x28] sm:$0xf]
    %v62 = vld [vmem:[%s1 + $0x2c] sm:$0xf]
    %v63 = vld [vmem:[%s1 + $0x30] sm:$0xf]
    %v64 = vld [vmem:[%s1 + $0x34] sm:$0xf]
    %v65 = vld [vmem:[%s1 + $0x38] sm:$0xf]
    %v66 = vld [vmem:[%s1 + $0x3c] sm:$0xf]
    %v67 = vld [vmem:[#allocation2] sm:$0xff]
    %v68 = vld [vmem:[#allocation2 + $0x8] sm:$0xff]
    %v69 = vld [vmem:[#allocation2 + $0x10] sm:$0xff]
    %v70 = vld [vmem:[#allocation2 + $0x18] sm:$0xff]
    %v71 = vld [vmem:[#allocation2 + $0x20] sm:$0xff]
    %v72 = vld [vmem:[#allocation2 + $0x28] sm:$0xff]
    %v73 = vld [vmem:[#allocation2 + $0x30] sm:$0xff]
    %v74 = vld [vmem:[#allocation2 + $0x38] sm:$0xff]
    %v75 = vld [vmem:[#allocation2 + $0x40] sm:$0xff]
    %v76 = vld [vmem:[#allocation2 + $0x48] sm:$0xff]
    %v77 = vld [vmem:[#allocation2 + $0x50] sm:$0xff]
    %v78 = vld [vmem:[#allocation2 + $0x58] sm:$0xff]
    %v79 = vld [vmem:[#allocation2 + $0x60] sm:$0xff]
    %v80 = vld [vmem:[#allocation2 + $0x68] sm:$0xff]
    %v81 = vld [vmem:[#allocation2 + $0x70] sm:$0xff]
    %v82 = vld [vmem:[#allocation2 + $0x78] sm:$0xff]
    %v99 = vunpack.c.l.b16 %v51
    %v100 = vunpack.c.l.b16 %v52
    %v101 = vunpack.c.l.b16 %v53
    %v102 = vunpack.c.l.b16 %v54
    %v103 = vunpack.c.l.b16 %v55
    %v104 = vunpack.c.l.b16 %v56
    %v105 = vunpack.c.l.b16 %v57
    %v106 = vunpack.c.l.b16 %v58
    %v107 = vunpack.c.l.b16 %v59
    %v108 = vunpack.c.l.b16 %v60
    %v109 = vunpack.c.l.b16 %v61
    %v110 = vunpack.c.l.b16 %v62
    %v111 = vunpack.c.l.b16 %v63
    %v112 = vunpack.c.l.b16 %v64
    %v113 = vunpack.c.l.b16 %v65
    %v114 = vunpack.c.l.b16 %v66
    %v115 = vpack.c.b16 %v100, %v99
    %v116 = vpack.c.b16 %v102, %v101
    %v117 = vpack.c.b16 %v104, %v103
    %v118 = vpack.c.b16 %v106, %v105
    %v119 = vpack.c.b16 %v108, %v107
    %v120 = vpack.c.b16 %v110, %v109
    %v121 = vpack.c.b16 %v112, %v111
    %v122 = vpack.c.b16 %v114, %v113
    %131 = vmatprep.subr.bf16.mxu0 0
    %132 = vmatpush1.bf16.msra.mxu0 %v115
    %133 = vmatprep.subr.bf16.mxu0 0
    %134 = vmatpush1.bf16.msra.mxu0 %v116
    %135 = vmatprep.subr.bf16.mxu0 0
    %136 = vmatpush1.bf16.msra.mxu0 %v117
    %137 = vmatprep.subr.bf16.mxu0 0
    %138 = vmatpush1.bf16.msra.mxu0 %v118
    %139 = vmatprep.subr.bf16.mxu0 0
    %140 = vmatpush1.bf16.msra.mxu0 %v119
    %141 = vmatprep.subr.bf16.mxu0 0
    %142 = vmatpush1.bf16.msra.mxu0 %v120
    %143 = vmatprep.subr.bf16.mxu0 0
    %144 = vmatpush1.bf16.msra.mxu0 %v121
    %145 = vmatprep.subr.bf16.mxu0 0
    %146 = vmatpush1.bf16.msra.mxu0 %v122
    %147 = vmatprep.subr.bf16.mxu0 0
    %148 = vmatpush1.bf16.msra.mxu0 0
    %149 = vmatprep.subr.bf16.mxu0 0
    %150 = vmatpush1.bf16.msra.mxu0 0
    %151 = vmatprep.subr.bf16.mxu0 0
    %152 = vmatpush1.bf16.msra.mxu0 0
    %153 = vmatprep.subr.bf16.mxu0 0
    %154 = vmatpush1.bf16.msra.mxu0 0
    %155 = vmatprep.subr.bf16.mxu0 0
    %156 = vmatpush1.bf16.msra.mxu0 0
    %157 = vmatprep.subr.bf16.mxu0 0
    %158 = vmatpush1.bf16.msra.mxu0 0
    %159 = vmatprep.subr.bf16.mxu0 0
    %160 = vmatpush1.bf16.msra.mxu0 0
    %161 = vmatprep.subr.bf16.mxu0 0
    %162 = vmatpush1.bf16.msra.mxu0 0
    %163 = vmatprep.mubr.bf16.mxu0 0
    %164 = vmatmul.mubr.bf16.gmra.mrb[0].mxu0 %v43
    %v165 = vpop.f32.mrb[0].mxu0
    %v166 = vadd.f32 0.0, %v165
    %v167 = vpop.f32.mrb[0].mxu0
    %v168 = vpop.f32.mrb[0].mxu0
    %v169 = vadd.f32 0.0, %v168
    %v170 = vpop.f32.mrb[0].mxu0
    %171 = vmatprep.mubr.bf16.mxu0 0
    %172 = vmatmul.mubr.bf16.gmra.mrb[0].mxu0 %v44
    %v173 = vpop.f32.mrb[0].mxu0
    %v174 = vadd.f32 0.0, %v173
    %v175 = vpop.f32.mrb[0].mxu0
    %v176 = vpop.f32.mrb[0].mxu0
    %v177 = vadd.f32 0.0, %v176
    %v178 = vpop.f32.mrb[0].mxu0
    %179 = vmatprep.mubr.bf16.mxu0 0
    %180 = vmatmul.mubr.bf16.gmra.mrb[0].mxu0 %v45
    %v181 = vpop.f32.mrb[0].mxu0
    %v182 = vadd.f32 0.0, %v181
    %v183 = vpop.f32.mrb[0].mxu0
    %v184 = vpop.f32.mrb[0].mxu0
    %v185 = vadd.f32 0.0, %v184
    %v186 = vpop.f32.mrb[0].mxu0
    %187 = vmatprep.mubr.bf16.mxu0 0
    %188 = vmatmul.mubr.bf16.gmra.mrb[0].mxu0 %v46
    %v189 = vpop.f32.mrb[0].mxu0
    %v190 = vadd.f32 0.0, %v189
    %v191 = vpop.f32.mrb[0].mxu0
    %v192 = vpop.f32.mrb[0].mxu0
    %v193 = vadd.f32 0.0, %v192
    %v194 = vpop.f32.mrb[0].mxu0
    %195 = vmatprep.mubr.bf16.mxu0 0
    %196 = vmatmul.mubr.bf16.gmra.mrb[0].mxu0 %v47
    %v197 = vpop.f32.mrb[0].mxu0
    %v198 = vadd.f32 0.0, %v197
    %v199 = vpop.f32.mrb[0].mxu0
    %v200 = vpop.f32.mrb[0].mxu0
    %v201 = vadd.f32 0.0, %v200
    %v202 = vpop.f32.mrb[0].mxu0
    %203 = vmatprep.mubr.bf16.mxu0 0
    %204 = vmatmul.mubr.bf16.gmra.mrb[0].mxu0 %v48
    %v205 = vpop.f32.mrb[0].mxu0
    %v206 = vadd.f32 0.0, %v205
    %v207 = vpop.f32.mrb[0].mxu0
    %v208 = vpop.f32.mrb[0].mxu0
    %v209 = vadd.f32 0.0, %v208
    %v210 = vpop.f32.mrb[0].mxu0
    %211 = vmatprep.mubr.bf16.mxu0 0
    %212 = vmatmul.mubr.bf16.gmra.mrb[0].mxu0 %v49
    %v213 = vpop.f32.mrb[0].mxu0
    %v214 = vadd.f32 0.0, %v213
    %v215 = vpop.f32.mrb[0].mxu0
    %v216 = vpop.f32.mrb[0].mxu0
    %v217 = vadd.f32 0.0, %v216
    %v218 = vpop.f32.mrb[0].mxu0
    %219 = vmatprep.mubr.bf16.mxu0 0
    %220 = vmatmul.mubr.bf16.gmra.mrb[0].mxu0 %v50
    %v221 = vpop.f32.mrb[0].mxu0
    %v222 = vadd.f32 0.0, %v221
    %v223 = vpop.f32.mrb[0].mxu0
    %v224 = vpop.f32.mrb[0].mxu0
    %v225 = vadd.f32 0.0, %v224
    %v226 = vpop.f32.mrb[0].mxu0
    %227 = vdwg.mxu0
    %v228 = vadd.f32 %v67, %v166
    %v229 = vadd.f32 %v68, %v169
    %v230 = vadd.f32 %v69, %v174
    %v231 = vadd.f32 %v70, %v177
    %v232 = vadd.f32 %v71, %v182
    %v233 = vadd.f32 %v72, %v185
    %v234 = vadd.f32 %v73, %v190
    %v235 = vadd.f32 %v74, %v193
    %v236 = vadd.f32 %v75, %v198
    %v237 = vadd.f32 %v76, %v201
    %v238 = vadd.f32 %v77, %v206
    %v239 = vadd.f32 %v78, %v209
    %v240 = vadd.f32 %v79, %v214
    %v241 = vadd.f32 %v80, %v217
    %v242 = vadd.f32 %v81, %v222
    %v243 = vadd.f32 %v82, %v225
    %244 = vst [vmem:[#allocation2] sm:$0xff] %v228
    %245 = vst [vmem:[#allocation2 + $0x8] sm:$0xff] %v229
    %246 = vst [vmem:[#allocation2 + $0x10] sm:$0xff] %v230
    %247 = vst [vmem:[#allocation2 + $0x18] sm:$0xff] %v231
    %248 = vst [vmem:[#allocation2 + $0x20] sm:$0xff] %v232
    %249 = vst [vmem:[#allocation2 + $0x28] sm:$0xff] %v233
    %250 = vst [vmem:[#allocation2 + $0x30] sm:$0xff] %v234
    %251 = vst [vmem:[#allocation2 + $0x38] sm:$0xff] %v235
    %252 = vst [vmem:[#allocation2 + $0x40] sm:$0xff] %v236
    %253 = vst [vmem:[#allocation2 + $0x48] sm:$0xff] %v237
    %254 = vst [vmem:[#allocation2 + $0x50] sm:$0xff] %v238
    %255 = vst [vmem:[#allocation2 + $0x58] sm:$0xff] %v239
    %256 = vst [vmem:[#allocation2 + $0x60] sm:$0xff] %v240
    %257 = vst [vmem:[#allocation2 + $0x68] sm:$0xff] %v241
    %258 = vst [vmem:[#allocation2 + $0x70] sm:$0xff] %v242
    %259 = vst [vmem:[#allocation2 + $0x78] sm:$0xff] %v243
    // Predicated region
    $region22: #{tpu_custom_call.1} parent=1 // pred_check
      %p260 = pneg %p19
    $region23: #{tpu_custom_call.1} parent=1 // pred_check_branch
      %262 = sbr.rel (%p260) target = $region25
    $region24: #{tpu_custom_call.1} parent=1 // pred_region
      %v263 = vld [vmem:[#allocation2] sm:$0xff]
      %v264 = vld [vmem:[#allocation2 + $0x8] sm:$0xff]
      %v265 = vld [vmem:[#allocation2 + $0x10] sm:$0xff]
      %v266 = vld [vmem:[#allocation2 + $0x18] sm:$0xff]
      %v267 = vld [vmem:[#allocation2 + $0x20] sm:$0xff]
      %v268 = vld [vmem:[#allocation2 + $0x28] sm:$0xff]
      %v269 = vld [vmem:[#allocation2 + $0x30] sm:$0xff]
      %v270 = vld [vmem:[#allocation2 + $0x38] sm:$0xff]
      %v271 = vld [vmem:[#allocation2 + $0x40] sm:$0xff]
      %v272 = vld [vmem:[#allocation2 + $0x48] sm:$0xff]
      %v273 = vld [vmem:[#allocation2 + $0x50] sm:$0xff]
      %v274 = vld [vmem:[#allocation2 + $0x58] sm:$0xff]
      %v275 = vld [vmem:[#allocation2 + $0x60] sm:$0xff]
      %v276 = vld [vmem:[#allocation2 + $0x68] sm:$0xff]
      %v277 = vld [vmem:[#allocation2 + $0x70] sm:$0xff]
      %v278 = vld [vmem:[#allocation2 + $0x78] sm:$0xff]
      %v279 = vld [vmem:[%s2] sm:$0xff]
      %v280 = vld [vmem:[%s2 + $0x8] sm:$0xff]
      %v281 = vld [vmem:[%s2 + $0x10] sm:$0xff]
      %v282 = vld [vmem:[%s2 + $0x18] sm:$0xff]
      %v283 = vld [vmem:[%s2 + $0x20] sm:$0xff]
      %v284 = vld [vmem:[%s2 + $0x28] sm:$0xff]
      %v285 = vld [vmem:[%s2 + $0x30] sm:$0xff]
      %v286 = vld [vmem:[%s2 + $0x38] sm:$0xff]
      %v287 = vld [vmem:[%s2 + $0x40] sm:$0xff]
      %v288 = vld [vmem:[%s2 + $0x48] sm:$0xff]
      %v289 = vld [vmem:[%s2 + $0x50] sm:$0xff]
      %v290 = vld [vmem:[%s2 + $0x58] sm:$0xff]
      %v291 = vld [vmem:[%s2 + $0x60] sm:$0xff]
      %v292 = vld [vmem:[%s2 + $0x68] sm:$0xff]
      %v293 = vld [vmem:[%s2 + $0x70] sm:$0xff]
      %v294 = vld [vmem:[%s2 + $0x78] sm:$0xff]
      %296 = vset.pattern.permute.xlu0 0
      %297 = vperm.xlu0 %296, %v279
      %v298 = vpop.permute.xlu0 %297
      %301 = vset.pattern.permute.xlu0 0
      %302 = vperm.xlu0 %301, %v280
      %v303 = vpop.permute.xlu0 %302
      %306 = vset.pattern.permute.xlu0 0
      %307 = vperm.xlu0 %306, %v281
      %v308 = vpop.permute.xlu0 %307
      %311 = vset.pattern.permute.xlu0 0
      %312 = vperm.xlu0 %311, %v282
      %v313 = vpop.permute.xlu0 %312
      %316 = vset.pattern.permute.xlu0 0
      %317 = vperm.xlu0 %316, %v283
      %v318 = vpop.permute.xlu0 %317
      %321 = vset.pattern.permute.xlu0 0
      %322 = vperm.xlu0 %321, %v284
      %v323 = vpop.permute.xlu0 %322
      %326 = vset.pattern.permute.xlu0 0
      %327 = vperm.xlu0 %326, %v285
      %v328 = vpop.permute.xlu0 %327
      %331 = vset.pattern.permute.xlu0 0
      %332 = vperm.xlu0 %331, %v286
      %v333 = vpop.permute.xlu0 %332
      %336 = vset.pattern.permute.xlu0 0
      %337 = vperm.xlu0 %336, %v287
      %v338 = vpop.permute.xlu0 %337
      %341 = vset.pattern.permute.xlu0 0
      %342 = vperm.xlu0 %341, %v288
      %v343 = vpop.permute.xlu0 %342
      %346 = vset.pattern.permute.xlu0 0
      %347 = vperm.xlu0 %346, %v289
      %v348 = vpop.permute.xlu0 %347
      %351 = vset.pattern.permute.xlu0 0
      %352 = vperm.xlu0 %351, %v290
      %v353 = vpop.permute.xlu0 %352
      %356 = vset.pattern.permute.xlu0 0
      %357 = vperm.xlu0 %356, %v291
      %v358 = vpop.permute.xlu0 %357
      %361 = vset.pattern.permute.xlu0 0
      %362 = vperm.xlu0 %361, %v292
      %v363 = vpop.permute.xlu0 %362
      %366 = vset.pattern.permute.xlu0 0
      %367 = vperm.xlu0 %366, %v293
      %v368 = vpop.permute.xlu0 %367
      %371 = vset.pattern.permute.xlu0 0
      %372 = vperm.xlu0 %371, %v294
      %v373 = vpop.permute.xlu0 %372
      %v375 = vmul.f32 %v263, %v298
      %v376 = vmul.f32 %v264, %v303
      %v377 = vmul.f32 %v265, %v308
      %v378 = vmul.f32 %v266, %v313
      %v379 = vmul.f32 %v267, %v318
      %v380 = vmul.f32 %v268, %v323
      %v381 = vmul.f32 %v269, %v328
      %v382 = vmul.f32 %v270, %v333
      %v383 = vmul.f32 %v271, %v338
      %v384 = vmul.f32 %v272, %v343
      %v385 = vmul.f32 %v273, %v348
      %v386 = vmul.f32 %v274, %v353
      %v387 = vmul.f32 %v275, %v358
      %v388 = vmul.f32 %v276, %v363
      %v389 = vmul.f32 %v277, %v368
      %v390 = vmul.f32 %v278, %v373
      %v391 = vld [vmem:[%s3] sm:$0x1]
      %v393 = vlaneseq
      %v394 = vshrl.u32 %v393, 7
      %v395 = vsub.s32 0, %v394
      %v396 = vrot.slane %v391, %v395
      %v398 = vadd.f32 %v375, %v396
      %v399 = vadd.f32 %v376, %v396
      %v400 = vadd.f32 %v377, %v396
      %v401 = vadd.f32 %v378, %v396
      %v402 = vadd.f32 %v379, %v396
      %v403 = vadd.f32 %v380, %v396
      %v404 = vadd.f32 %v381, %v396
      %v405 = vadd.f32 %v382, %v396
      %v406 = vadd.f32 %v383, %v396
      %v407 = vadd.f32 %v384, %v396
      %v408 = vadd.f32 %v385, %v396
      %v409 = vadd.f32 %v386, %v396
      %v410 = vadd.f32 %v387, %v396
      %v411 = vadd.f32 %v388, %v396
      %v412 = vadd.f32 %v389, %v396
      %v413 = vadd.f32 %v390, %v396
      %v414 = vmax.f32 %v398, 0.0
      %v415 = vmax.f32 %v399, 0.0
      %v416 = vmax.f32 %v400, 0.0
      %v417 = vmax.f32 %v401, 0.0
      %v418 = vmax.f32 %v402, 0.0
      %v419 = vmax.f32 %v403, 0.0
      %v420 = vmax.f32 %v404, 0.0
      %v421 = vmax.f32 %v405, 0.0
      %v422 = vmax.f32 %v406, 0.0
      %v423 = vmax.f32 %v407, 0.0
      %v424 = vmax.f32 %v408, 0.0
      %v425 = vmax.f32 %v409, 0.0
      %v426 = vmax.f32 %v410, 0.0
      %v427 = vmax.f32 %v411, 0.0
      %v428 = vmax.f32 %v412, 0.0
      %v429 = vmax.f32 %v413, 0.0
      %430 = vst [vmem:[#allocation2] sm:$0xff] %v414
      %431 = vst [vmem:[#allocation2 + $0x8] sm:$0xff] %v415
      %432 = vst [vmem:[#allocation2 + $0x10] sm:$0xff] %v416
      %433 = vst [vmem:[#allocation2 + $0x18] sm:$0xff] %v417
      %434 = vst [vmem:[#allocation2 + $0x20] sm:$0xff] %v418
      %435 = vst [vmem:[#allocation2 + $0x28] sm:$0xff] %v419
      %436 = vst [vmem:[#allocation2 + $0x30] sm:$0xff] %v420
      %437 = vst [vmem:[#allocation2 + $0x38] sm:$0xff] %v421
      %438 = vst [vmem:[#allocation2 + $0x40] sm:$0xff] %v422
      %439 = vst [vmem:[#allocation2 + $0x48] sm:$0xff] %v423
      %440 = vst [vmem:[#allocation2 + $0x50] sm:$0xff] %v424
      %441 = vst [vmem:[#allocation2 + $0x58] sm:$0xff] %v425
      %442 = vst [vmem:[#allocation2 + $0x60] sm:$0xff] %v426
      %443 = vst [vmem:[#allocation2 + $0x68] sm:$0xff] %v427
      %444 = vst [vmem:[#allocation2 + $0x70] sm:$0xff] %v428
      %445 = vst [vmem:[#allocation2 + $0x78] sm:$0xff] %v429
    $region25: #{tpu_custom_call.1} parent=1 // pred_fallthru
      _
    // Predicated region
    $region26: #{tpu_custom_call.1} parent=1 // pred_check
      _
    $region27: #{tpu_custom_call.1} parent=1 // pred_check_branch
      %447 = sbr.rel (0) target = $region29
    $region28: #{tpu_custom_call.1} parent=1 // pred_region
      %s449 = ssub.s32 2048, 2048
      %450 = vsyncadd [#allocation3], %s449
      %s451 = sshll.u32 [#allocation2], 4
      %s452 = int_to_ptr.vmem [resolvable:$true] %s451
      %457 = dma.vmem_to_hbm [thread:$0]  %s452, 2048, %s4, [#allocation3], 128, 128, 8
    $region29: #{tpu_custom_call.1} parent=1 // pred_fallthru
      _
    // Predicated region
    $region30: #{tpu_custom_call.1} parent=1 // pred_check
      _
    $region31: #{tpu_custom_call.1} parent=1 // pred_check_branch
      %459 = sbr.rel (0) target = $region33
    $region32: #{tpu_custom_call.1} parent=1 // pred_region
      %460 = dma.done [#allocation3], 2048
    $region33: #{tpu_custom_call.1} parent=1 // pred_fallthru
      _
    %461 = vsyncpa [#allocation3], 1

</llo_original>
